<compile_context>
chip_gen: v6e
topology: v6e:2x2x1
jax: 0.10.0
libtpu: 0.0.40
codegen_flags: <defaults>
</compile_context>

<pallas_src>
import functools

import numpy as np
import jax
import jax.numpy as jnp
from jax.experimental import pallas as pl
from jax.experimental.pallas import tpu as pltpu


def _round_up(x, m):
    return (x + m - 1) // m * m


def _choose_voxel_tile(m, max_tile=2048):
    """Big tiles amortize the ~0.35us/step overhead; keep >=2 tiles for megacore."""
    if m <= 128:
        return 128
    half = _round_up((m + 1) // 2, 128)
    return min(max_tile, half)


def _gen_deconv_kernel(w_ref, p_ref, b_ref, o_ref, acc_ref):
    # w_ref  : (Co, tk)   bf16 weight slab (lane axis = K-dim slab, zero padded)
    # p_ref  : (tk, tm)   bf16 im2col patch slab (lane axis = output voxels)
    # b_ref  : (Co, 1)    f32 bias
    # o_ref  : (Co, tm)   f32 fused output tile (lane-dense: tm % 128 == 0)
    # acc_ref: (Co, tm)   f32 accumulator scratch, persists across the k grid axis
    k = pl.program_id(1)

    @pl.when(k == 0)
    def _():
        acc_ref[...] = jnp.zeros_like(acc_ref)

    acc_ref[...] += jnp.dot(w_ref[...], p_ref[...],
                            preferred_element_type=jnp.float32)

    @pl.when(k == pl.num_programs(1) - 1)
    def _():
        acc = acc_ref[...] + b_ref[...]                       # bias (lane broadcast)
        # PixelNorm: x / sqrt(mean(x**2) over channels + 1e-8); channels = sublane axis 0.
        ms = jnp.mean(acc * acc, axis=0, keepdims=True)
        normed = acc * jax.lax.rsqrt(ms + 1e-8)
        # LeakyReLU(0.2)
        o_ref[...] = jnp.where(normed >= 0, normed, 0.2 * normed)


def prepare_gen_deconv_params(weight, bias):
    """One-time (init-time) transform of ConvTranspose3d params for the kernel.

    weight: (C_in, C_out, K, K, K); bias: (C_out,).
    Returns (w2 bf16 (Co, Kdim_pad), b2 f32 (Co, 1), meta=(Ci, Co, K, tk)).
    """
    Ci, Co, K = int(weight.shape[0]), int(weight.shape[1]), int(weight.shape[2])
    kdim = K * K * K * Ci
    tk = min(512, _round_up(kdim, 128))          # K-dim slab streamed per grid step
    kdim_pad = _round_up(kdim, tk)
    wf = weight[:, :, ::-1, ::-1, ::-1]                              # spatial flip
    w2 = jnp.transpose(wf, (1, 2, 3, 4, 0)).reshape(Co, kdim)        # (Co, kd*kh*kw*Ci)
    w2 = jnp.pad(w2, ((0, 0), (0, kdim_pad - kdim))).astype(jnp.bfloat16)
    b2 = bias.reshape(Co, 1).astype(jnp.float32)
    return w2, b2, (Ci, Co, K, tk)


@functools.partial(jax.jit, static_argnames=("meta", "stride", "padding"))
def gen_deconv_forward(x, w2, b2, meta, stride=1, padding=0):
    """x: (N, C_in, D, H, W) f32; w2/b2/meta from prepare_gen_deconv_params."""
    Ci, Co, K, tk = meta
    N, Ci_x, D, H, W = x.shape
    assert Ci_x == Ci
    assert K - 1 - padding >= 0, "padding must be <= kernel_size - 1 for this impl"
    Do = (D - 1) * stride - 2 * padding + K
    Ho = (H - 1) * stride - 2 * padding + K
    Wo = (W - 1) * stride - 2 * padding + K
    pb = K - 1 - padding

    # ---- glue: channel-first bf16 activations, zero-insertion, border pad ----
    xc = jnp.transpose(x, (1, 0, 2, 3, 4)).astype(jnp.bfloat16)   # (Ci, N, D, H, W)
    if stride > 1:
        # TODO(synk): replace zero-insertion with the sub-pixel (phase) decomposition
        # to avoid stride**3 wasted bytes/FLOPs for strided deconvs.
        xz = jnp.zeros((Ci, N, (D - 1) * stride + 1, (H - 1) * stride + 1,
                        (W - 1) * stride + 1), jnp.bfloat16)
        xz = xz.at[:, :, ::stride, ::stride, ::stride].set(xc)
    else:
        xz = xc
    xp = jnp.pad(xz, ((0, 0), (0, 0), (pb, pb), (pb, pb), (pb, pb)))

    # ---- glue: im2col in (Kdim, M) layout so voxels land on the lane axis ----
    # TODO(synk): the K**3 shifted copies are still materialized in HBM by XLA; fully
    # removing that amplification needs halo-windowed manual DMA inside the kernel.
    slabs = []
    for kd in range(K):
        for kh in range(K):
            for kw in range(K):
                slabs.append(xp[:, :, kd:kd + Do, kh:kh + Ho, kw:kw + Wo])
    patches = jnp.stack(slabs, axis=0)                # (K^3, Ci, N, Do, Ho, Wo)
    M = N * Do * Ho * Wo
    kdim = K * K * K * Ci
    patches = patches.reshape(kdim, M)                # bf16

    kdim_pad = w2.shape[1]
    tm = _choose_voxel_tile(M)
    M_pad = _round_up(M, tm)
    patches = jnp.pad(patches, ((0, kdim_pad - kdim), (0, M_pad - M)))

    num_i = M_pad // tm
    num_k = kdim_pad // tk

    # VMEM budget: double-buffered bf16 slabs + f32 out tiles + f32 accumulator.
    footprint = (2 * tk * tm * 2 + 2 * Co * tk * 2 + 2 * Co * tm * 4
                 + Co * tm * 4 + Co * 4)
    vmem_limit = int(min(48 * 1024 * 1024, max(16 * 1024 * 1024, 2 * footprint)))

    out = pl.pallas_call(
        _gen_deconv_kernel,
        out_shape=jax.ShapeDtypeStruct((Co, M_pad), jnp.float32),
        grid_spec=pltpu.PrefetchScalarGridSpec(
            num_scalar_prefetch=0,
            grid=(num_i, num_k),                          # reduction axis (k) last
            in_specs=[
                pl.BlockSpec((Co, tk), lambda i, k: (0, k)),   # weight K-slab
                pl.BlockSpec((tk, tm), lambda i, k: (k, i)),   # patches slab
                pl.BlockSpec((Co, 1), lambda i, k: (0, 0)),    # bias
            ],
            out_specs=pl.BlockSpec((Co, tm), lambda i, k: (0, i)),
            scratch_shapes=[pltpu.VMEM((Co, tm), jnp.float32)],
        ),
        compiler_params=pltpu.CompilerParams(
            dimension_semantics=("parallel", "arbitrary"),
            vmem_limit_bytes=vmem_limit,
        ),
        cost_estimate=pl.CostEstimate(
            flops=2 * M_pad * kdim_pad * Co,
            transcendentals=M_pad,                      # one rsqrt per output voxel
            bytes_accessed=(kdim_pad * M_pad * 2        # patches read (bf16)
                            + num_i * Co * kdim_pad * 2 # weight re-read per voxel tile
                            + Co * M_pad * 4),          # output write (f32)
        ),
    )(w2, patches, b2)

    y = out[:, :M].reshape(Co, N, Do, Ho, Wo)
    return jnp.transpose(y, (1, 0, 2, 3, 4))            # back to NCDHW


def _ref_forward(x, w, b, stride, padding):
    """Pure-numpy reference of ConvTranspose3d + PixelNorm + LeakyReLU(0.2)."""
    x = np.asarray(x, np.float32)
    w = np.asarray(w, np.float32)
    b = np.asarray(b, np.float32)
    N, Ci, D, H, W = x.shape
    Co, K = w.shape[1], w.shape[2]
    Df, Hf, Wf = (D - 1) * stride + K, (H - 1) * stride + K, (W - 1) * stride + K
    y = np.zeros((N, Co, Df, Hf, Wf), np.float32)
    for kd in range(K):
        for kh in range(K):
            for kw in range(K):
                contrib = np.einsum("nidhw,io->nodhw", x, w[:, :, kd, kh, kw])
                y[:, :, kd:kd + (D - 1) * stride + 1:stride,
                        kh:kh + (H - 1) * stride + 1:stride,
                        kw:kw + (W - 1) * stride + 1:stride] += contrib
    Do = (D - 1) * stride - 2 * padding + K
    Ho = (H - 1) * stride - 2 * padding + K
    Wo = (W - 1) * stride - 2 * padding + K
    y = y[:, :, padding:padding + Do, padding:padding + Ho, padding:padding + Wo]
    y = y + b.reshape(1, Co, 1, 1, 1)
    ms = np.mean(y * y, axis=1, keepdims=True)
    yn = y / np.sqrt(ms + 1e-8)
    return np.where(yn >= 0, yn, 0.2 * yn)


if __name__ == "__main__":
    key = jax.random.PRNGKey(0)
    k1, k2, k3 = jax.random.split(key, 3)

    # small shapes consistent with genDeconv(in_channels=4, out_channels=8, kernel_size=3)
    N, Ci, Co, K, D = 2, 4, 8, 3, 4
    stride, padding = 1, 0

    x = jax.random.normal(k1, (N, Ci, D, D, D), jnp.float32)
    weight = 0.1 * jax.random.normal(k2, (Ci, Co, K, K, K), jnp.float32)
    bias = 0.1 * jax.random.normal(k3, (Co,), jnp.float32)

    # weight flip/transpose/pad hoisted out of the per-call path (init-time).
    w2, b2, meta = prepare_gen_deconv_params(weight, bias)

    out = gen_deconv_forward(x, w2, b2, meta=meta, stride=stride, padding=padding)
    out = jax.block_until_ready(out)

    ref = _ref_forward(x, weight, bias, stride, padding)
    np.testing.assert_allclose(np.asarray(out), ref, rtol=5e-2, atol=5e-2)

    print("KERNEL_OK")
</pallas_src>

<mosaic_0001>
module attributes {stable_mosaic.version = 11 : i64} {
  func.func @_gen_deconv_kernel(%arg0: i32, %arg1: i32, %arg2: memref<8x128xbf16, #tpu.memory_space<vmem>>, %arg3: memref<128x256xbf16, #tpu.memory_space<vmem>>, %arg4: memref<8x1xf32, #tpu.memory_space<vmem>>, %arg5: memref<8x256xf32, #tpu.memory_space<vmem>>, %arg6: memref<8x256xf32, #tpu.memory_space<vmem>>) attributes {dimension_semantics = [#tpu.dimension_semantics<parallel>, #tpu.dimension_semantics<arbitrary>], iteration_bounds = array<i64: 2, 1>, scalar_prefetch = 0 : i64, scratch_operands = 1 : i64, tpu.core_type = #tpu.core_type<tc>, window_params = [{transform_indices = @transform_0, window_bounds = array<i64: 8, 128>}, {transform_indices = @transform_1, window_bounds = array<i64: 128, 256>}, {pipeline_mode = #tpu.pipeline_mode<synchronous>, transform_indices = @transform_2, window_bounds = array<i64: 8, 1>}, {transform_indices = @transform_3, window_bounds = array<i64: 8, 256>}]} {
    %c0_i32 = arith.constant 0 : i32
    %0 = arith.cmpi eq, %arg1, %c0_i32 : i32
    %1 = arith.extui %0 : i1 to i32
    %c0_i32_0 = arith.constant 0 : i32
    %2 = arith.cmpi ne, %1, %c0_i32_0 : i32
    scf.if %2 {
      %cst_10 = arith.constant 0.000000e+00 : f32
      %12 = vector.broadcast %cst_10 : f32 to vector<8x256xf32>
      %c0_11 = arith.constant 0 : index
      %c0_12 = arith.constant 0 : index
      %13 = vector.load %arg6[%c0_11, %c0_12] : memref<8x256xf32, #tpu.memory_space<vmem>>, vector<8x256xf32>
      tpu.vector_store %arg6[%c0_11, %c0_12], %12 {strides = array<i32>} : memref<8x256xf32, #tpu.memory_space<vmem>>, vector<8x256xf32>,
    } else {
    }
    %c0 = arith.constant 0 : index
    %c0_1 = arith.constant 0 : index
    %3 = vector.load %arg6[%c0, %c0_1] : memref<8x256xf32, #tpu.memory_space<vmem>>, vector<8x256xf32>
    %c0_2 = arith.constant 0 : index
    %c0_3 = arith.constant 0 : index
    %4 = vector.load %arg2[%c0_2, %c0_3] : memref<8x128xbf16, #tpu.memory_space<vmem>>, vector<8x128xbf16>
    %c0_4 = arith.constant 0 : index
    %c0_5 = arith.constant 0 : index
    %5 = vector.load %arg3[%c0_4, %c0_5] : memref<128x256xbf16, #tpu.memory_space<vmem>>, vector<128x256xbf16>
    %cst = arith.constant dense<0.000000e+00> : vector<8x256xf32>
    %6 = tpu.matmul %4, %5, %cst {dimension_numbers = #tpu.dot_dimension_numbers<[1], [0], [0], [1], [0, 0, 1, 1], [], []>} : vector<8x128xbf16>, vector<128x256xbf16>, vector<8x256xf32> -> vector<8x256xf32>
    %7 = arith.addf %3, %6 : vector<8x256xf32>
    %c0_6 = arith.constant 0 : index
    %c0_7 = arith.constant 0 : index
    %8 = vector.load %arg6[%c0_6, %c0_7] : memref<8x256xf32, #tpu.memory_space<vmem>>, vector<8x256xf32>
    tpu.vector_store %arg6[%c0_6, %c0_7], %7 {strides = array<i32>} : memref<8x256xf32, #tpu.memory_space<vmem>>, vector<8x256xf32>,
    %c0_i32_8 = arith.constant 0 : i32
    %9 = arith.cmpi eq, %arg1, %c0_i32_8 : i32
    %10 = arith.extui %9 : i1 to i32
    %c0_i32_9 = arith.constant 0 : i32
    %11 = arith.cmpi ne, %10, %c0_i32_9 : i32
    scf.if %11 {
      %c0_10 = arith.constant 0 : index
      %c0_11 = arith.constant 0 : index
      %12 = vector.load %arg6[%c0_10, %c0_11] : memref<8x256xf32, #tpu.memory_space<vmem>>, vector<8x256xf32>
      %c0_12 = arith.constant 0 : index
      %c0_13 = arith.constant 0 : index
      %13 = vector.load %arg4[%c0_12, %c0_13] : memref<8x1xf32, #tpu.memory_space<vmem>>, vector<8x1xf32>
      %14 = vector.broadcast %13 : vector<8x1xf32> to vector<8x256xf32>
      %15 = arith.addf %12, %14 : vector<8x256xf32>
      %16 = arith.mulf %15, %15 : vector<8x256xf32>
      %cst_14 = arith.constant dense<0.000000e+00> : vector<256xf32>
      %17 = vector.multi_reduction <add>, %16, %cst_14 [0] : vector<8x256xf32> to vector<256xf32>
      %18 = vector.shape_cast %17 : vector<256xf32> to vector<1x256xf32>
      %cst_15 = arith.constant 8.000000e+00 : f32
      %19 = vector.broadcast %cst_15 : f32 to vector<1x256xf32>
      %20 = arith.divf %18, %19 : vector<1x256xf32>
      %cst_16 = arith.constant 9.99999993E-9 : f32
      %21 = vector.broadcast %cst_16 : f32 to vector<1x256xf32>
      %22 = arith.addf %20, %21 : vector<1x256xf32>
      %23 = math.rsqrt %22 : vector<1x256xf32>
      %24 = vector.broadcast %23 : vector<1x256xf32> to vector<8x256xf32>
      %25 = arith.mulf %15, %24 : vector<8x256xf32>
      %cst_17 = arith.constant 0.000000e+00 : f32
      %26 = vector.broadcast %cst_17 : f32 to vector<8x256xf32>
      %27 = arith.cmpf oge, %25, %26 : vector<8x256xf32>
      %cst_18 = arith.constant 2.000000e-01 : f32
      %28 = vector.broadcast %cst_18 : f32 to vector<8x256xf32>
      %29 = arith.mulf %28, %25 : vector<8x256xf32>
      %30 = arith.select %27, %25, %29 : vector<8x256xi1>, vector<8x256xf32>
      %c0_19 = arith.constant 0 : index
      %c0_20 = arith.constant 0 : index
      %31 = vector.load %arg5[%c0_19, %c0_20] : memref<8x256xf32, #tpu.memory_space<vmem>>, vector<8x256xf32>
      tpu.vector_store %arg5[%c0_19, %c0_20], %30 {strides = array<i32>} : memref<8x256xf32, #tpu.memory_space<vmem>>, vector<8x256xf32>,
    } else {
    }
    return
  }
  func.func @transform_0(%arg0: i32, %arg1: i32) -> (i32, i32) {
    %c0_i32 = arith.constant 0 : i32
    %c0_i32_0 = arith.constant 0 : i32
    return %c0_i32, %arg1 : i32, i32
  }
  func.func @transform_1(%arg0: i32, %arg1: i32) -> (i32, i32) {
    %c0_i32 = arith.constant 0 : i32
    return %arg1, %arg0 : i32, i32
  }
  func.func @transform_2(%arg0: i32, %arg1: i32) -> (i32, i32) {
    %c0_i32 = arith.constant 0 : i32
    %c0_i32_0 = arith.constant 0 : i32
    %c0_i32_1 = arith.constant 0 : i32
    return %c0_i32, %c0_i32_0 : i32, i32
  }
  func.func @transform_3(%arg0: i32, %arg1: i32) -> (i32, i32) {
    %c0_i32 = arith.constant 0 : i32
    %c0_i32_0 = arith.constant 0 : i32
    return %c0_i32, %arg0 : i32, i32
  }
}

</mosaic_0001>

<llo_original>
// kernel: gen_deconv_forward.1
$region0: #{gen_deconv_forward.1}
  #allocation0 [shape = 'u32[]', space=smem, size = 0x4, offset = 0x4, fixed_abs, tag = 'smem constant byte address 0x4 - core index']
  #allocation1 [shape = 'u32[144,128]{1,0:T(1,128)}', space=vmem, size = 0x12000, scoped, tag = 'internal scratch']
  #allocation2 [shape = 'f32[8,256]{1,0:T(8,128)}', space=vmem, size = 0x2000, scoped, tag = 'scratch operand']
  %s0 = inlined_call_operand.vmem [shape: bf16[8,128], index: 0, kind: input, shape index: {}]
  %s1 = inlined_call_operand.vmem [shape: bf16[128,512], index: 1, kind: input, shape index: {}]
  %s2 = inlined_call_operand.vmem [shape: f32[8,1], index: 2, kind: input, shape index: {}]
  %s3 = inlined_call_operand.vmem [shape: f32[8,512], index: 3, kind: output, shape index: {}]
  %s4 = sld [smem:[#allocation0]]
  $region91: #{gen_deconv_forward.1} parent=0
    _
  %s6 = ssub.s32 1, %s4
  %s7 = scalar_select 0, %s6, %s4
  $region1: #{gen_deconv_forward.1} parent=0
    #allocation3 [shape = 'u8[131072]{0}', space=vmem, size = 0x20000, scoped, tag = 'input window, operand 1']
    loop: start=0, step=1, limit=4
    $region2: #{gen_deconv_forward.1} parent=1 // loop_pre_header
      _
    $region3: #{gen_deconv_forward.1} parent=1 // loop_header
      %s9 = sphi 0, %s13
      %p10 = scmp.ge.s32.totalorder %s9, 4
      %s16 = sphi 0, %s28
      %s17 = sphi 0, %s24
      %s18 = sphi 0, %s16
      %s19 = sphi 0, %s17
      %s20 = sphi 0, %s18
      %s21 = sphi 0, %s19
      %s31 = sphi 0, %s33
      %s34 = sphi 0, %s31
      %s35 = sphi 0, %s34
      %s51 = sphi 0, %s35
      %s59 = sphi 0, %s61
      %s62 = sphi 0, %s59
      %s63 = sphi 0, %s62
      %s79 = sphi 0, %s63
      %s83 = sphi 0, %s83
      %s85 = sphi 0, %s83
      %s86 = sphi 0, %s85
      %s100 = sphi 0, %s86
      %s106 = sphi 0, %s108
      %s109 = sphi 0, %s106
      %s110 = sphi 0, %s109
      %s126 = sphi 0, %s110
    $region4: #{gen_deconv_forward.1} parent=1 // loop_header_branch
      %12 = sbr.rel (%p10) target = $region8
    $region5: #{gen_deconv_forward.1} parent=1 // loop_body
      %s14 = ssub.s32 %s9, 1
      %s15 = ssub.s32 %s9, 2
      %s22 = sadd.s32 1, %s17
      %p23 = scmp.ge.s32.totalorder %s22, 1
      %s24 = scalar_select %p23, 0, %s22
      %s25 = sadd.s32 1, %s16
      %s26 = scalar_select %p23, %s25, %s16
      %p27 = scmp.ge.s32.totalorder %s26, 2
      %s28 = scalar_select %p27, 0, %s26
      %s29 = ssub.s32 %s17, %s24
      %p30 = scmp.eq.s32.totalorder %s29, 0
      %s32 = sadd.s32 %s31, 1
      %s33 = scalar_select %p30, %s31, %s32
      %p36 = pneg %p30
      %p37 = scmp.eq.s32.totalorder %s9, 1
      %p38 = por %p36, %p37
      %p39 = scmp.ne.s32.totalorder %s31, %s34
      %p40 = scmp.eq.s32.totalorder %s9, 0
      %p41 = por %p39, %p40
      %p42 = scmp.ne.s32.totalorder %s31, %s34
      %p43 = scmp.eq.s32.totalorder %s14, 1
      %p44 = por %p42, %p43
      %p45 = scmp.ne.s32.totalorder %s34, %s35
      %p46 = scmp.eq.s32.totalorder %s14, 0
      %p47 = por %p45, %p46
      %p48 = scmp.ne.s32.totalorder %s34, %s35
      %p49 = scmp.eq.s32.totalorder %s15, 1
      %p50 = por %p48, %p49
      %p52 = scmp.ne.s32.totalorder %s35, %s51
      %p53 = scmp.eq.s32.totalorder %s15, 0
      %p54 = por %p52, %p53
      %s55 = ssub.s32 %s17, %s24
      %s56 = ssub.s32 %s16, %s28
      %s57 = sor.u32 %s55, %s56
      %p58 = scmp.eq.s32.totalorder %s57, 0
      %s60 = sadd.s32 %s59, 1
      %s61 = scalar_select %p58, %s59, %s60
      %p64 = pneg %p58
      %p65 = scmp.eq.s32.totalorder %s9, 1
      %p66 = por %p64, %p65
      %p67 = scmp.ne.s32.totalorder %s59, %s62
      %p68 = scmp.eq.s32.totalorder %s9, 0
      %p69 = por %p67, %p68
      %p70 = scmp.ne.s32.totalorder %s59, %s62
      %p71 = scmp.eq.s32.totalorder %s14, 1
      %p72 = por %p70, %p71
      %p73 = scmp.ne.s32.totalorder %s62, %s63
      %p74 = scmp.eq.s32.totalorder %s14, 0
      %p75 = por %p73, %p74
      %p76 = scmp.ne.s32.totalorder %s62, %s63
      %p77 = scmp.eq.s32.totalorder %s15, 1
      %p78 = por %p76, %p77
      %p80 = scmp.ne.s32.totalorder %s63, %s79
      %p81 = scmp.eq.s32.totalorder %s15, 0
      %p82 = por %p80, %p81
      %s84 = sadd.s32 %s83, 1
      %p87 = scmp.eq.s32.totalorder %s9, 1
      %p88 = scmp.ne.s32.totalorder %s83, %s85
      %p89 = scmp.eq.s32.totalorder %s9, 0
      %p90 = por %p88, %p89
      %p91 = scmp.ne.s32.totalorder %s83, %s85
      %p92 = scmp.eq.s32.totalorder %s14, 1
      %p93 = por %p91, %p92
      %p94 = scmp.ne.s32.totalorder %s85, %s86
      %p95 = scmp.eq.s32.totalorder %s14, 0
      %p96 = por %p94, %p95
      %p97 = scmp.ne.s32.totalorder %s85, %s86
      %p98 = scmp.eq.s32.totalorder %s15, 1
      %p99 = por %p97, %p98
      %p101 = scmp.ne.s32.totalorder %s86, %s100
      %p102 = scmp.eq.s32.totalorder %s15, 0
      %p103 = por %p101, %p102
      %s104 = ssub.s32 %s16, %s28
      %p105 = scmp.eq.s32.totalorder %s104, 0
      %s107 = sadd.s32 %s106, 1
      %s108 = scalar_select %p105, %s106, %s107
      %p111 = pneg %p105
      %p112 = scmp.eq.s32.totalorder %s9, 1
      %p113 = por %p111, %p112
      %p114 = scmp.ne.s32.totalorder %s106, %s109
      %p115 = scmp.eq.s32.totalorder %s9, 0
      %p116 = por %p114, %p115
      %p117 = scmp.ne.s32.totalorder %s106, %s109
      %p118 = scmp.eq.s32.totalorder %s14, 1
      %p119 = por %p117, %p118
      %p120 = scmp.ne.s32.totalorder %s109, %s110
      %p121 = scmp.eq.s32.totalorder %s14, 0
      %p122 = por %p120, %p121
      %p123 = scmp.ne.s32.totalorder %s109, %s110
      %p124 = scmp.eq.s32.totalorder %s15, 1
      %p125 = por %p123, %p124
      %p127 = scmp.ne.s32.totalorder %s110, %s126
      %p128 = scmp.eq.s32.totalorder %s15, 0
      %p129 = por %p127, %p128
      %p130 = scmp.le.s32.totalorder 1, %s9
      %p131 = scmp.lt.s32.totalorder %s9, 3
      %p132 = pnand %p130, %p131
      %p133 = pneg %p132
      // Predicated region
      $region9: #{gen_deconv_forward.1} parent=5 // pred_check
        _
      $region10: #{gen_deconv_forward.1} parent=5 // pred_check_branch
        %135 = sbr.rel (%p132) target = $region12
      $region11: #{gen_deconv_forward.1} parent=5 // pred_region
        %s136 = ssub.s32 %s9, 1
        // Predicated region
        $region13: #{gen_deconv_forward.1} parent=11 // pred_check
          %p137 = pneg %p47
        $region14: #{gen_deconv_forward.1} parent=11 // pred_check_branch
          %139 = sbr.rel (%p137) target = $region16
        $region15: #{gen_deconv_forward.1} parent=11 // pred_region
          %p140 = scmp.lt.s32.totalorder %s19, 0
          %s141 = scalar_select %p140, %s19, 0
          %s142 = smul.addr %s141, 4
          %s143 = scalar_lea.vmem %s0, %s142
        $region16: #{gen_deconv_forward.1} parent=11 // pred_fallthru
          _
        // Predicated region
        $region17: #{gen_deconv_forward.1} parent=11 // pred_check
          %p144 = pneg %p96
        $region18: #{gen_deconv_forward.1} parent=11 // pred_check_branch
          %146 = sbr.rel (%p144) target = $region20
        $region19: #{gen_deconv_forward.1} parent=11 // pred_region
          _
        $region20: #{gen_deconv_forward.1} parent=11 // pred_fallthru
          _
      $region12: #{gen_deconv_forward.1} parent=5 // pred_fallthru
        _
      %p147 = scmp.lt.s32.totalorder %s9, 2
      // Predicated region
      $region21: #{gen_deconv_forward.1} parent=5 // pred_check
        %p148 = pneg %p147
      $region22: #{gen_deconv_forward.1} parent=5 // pred_check_branch
        %150 = sbr.rel (%p148) target = $region24
      $region23: #{gen_deconv_forward.1} parent=5 // pred_region
        // Predicated region
        $region25: #{gen_deconv_forward.1} parent=23 // pred_check
          %p151 = pneg %p69
        $region26: #{gen_deconv_forward.1} parent=23 // pred_check_branch
          %153 = sbr.rel (%p151) target = $region28
        $region27: #{gen_deconv_forward.1} parent=23 // pred_region
          %s154 = sand.u32 %s59, 1
          %s155 = sand.u32 %s59, 1
          %s156 = smul.addr %s155, 128
          %s157 = scalar_lea.vmem [#allocation3], %s156
          %s158 = smul.u32 16, %s17
          %s159 = smul.u32 2, %s16
          %s160 = smul.addr %s158, 4
          %s161 = sadd.s32 %s159, %s160
          %s162 = smul.addr %s161, 4
          %s163 = scalar_lea.vmem %s1, %s162
          // Predicated region
          $region29: #{gen_deconv_forward.1} parent=27 // pred_check
            _
          $region30: #{gen_deconv_forward.1} parent=27 // pred_check_branch
            %165 = sbr.rel (0) target = $region32
          $region31: #{gen_deconv_forward.1} parent=27 // pred_region
            // Predicated region
            $region33: #{gen_deconv_forward.1} parent=31 // pred_check
              _
            $region34: #{gen_deconv_forward.1} parent=31 // pred_check_branch
              %167 = sbr.rel (0) target = $region36
            $region35: #{gen_deconv_forward.1} parent=31 // pred_region
              // Predicated region
              $region48: #{gen_deconv_forward.1} parent=35 // pred_check
                _
              $region49: #{gen_deconv_forward.1} parent=35 // pred_check_branch
                %213 = sbr.rel (0) target = $region51
              $region50: #{gen_deconv_forward.1} parent=35 // pred_region
                loop: start=0, step=1, limit=1
                $region52: #{gen_deconv_forward.1} parent=50 // loop_pre_header
                  _
                $region53: #{gen_deconv_forward.1} parent=50 // loop_header
                  %s215 = sphi 0, %s219
                  %p216 = scmp.ge.s32.totalorder %s215, 1
                  %s220 = sphi %s163, %s163
                  %s221 = sphi %s157, %s157
                $region54: #{gen_deconv_forward.1} parent=50 // loop_header_branch
                  %218 = sbr.rel (%p216) target = $region58
                $region55: #{gen_deconv_forward.1} parent=50 // loop_body
                  %v222 = vld [vmem:[%s220] sm:$0xff]
                  %223 = vst [vmem:[%s221] sm:$0xff] %v222
                  %v224 = vld [vmem:[%s220 + $0x10] sm:$0xff]
                  %225 = vst [vmem:[%s221 + $0x8] sm:$0xff] %v224
                  %v226 = vld [vmem:[%s220 + $0x20] sm:$0xff]
                  %227 = vst [vmem:[%s221 + $0x10] sm:$0xff] %v226
                  %v228 = vld [vmem:[%s220 + $0x30] sm:$0xff]
                  %229 = vst [vmem:[%s221 + $0x18] sm:$0xff] %v228
                  %v230 = vld [vmem:[%s220 + $0x40] sm:$0xff]
                  %231 = vst [vmem:[%s221 + $0x20] sm:$0xff] %v230
                  %v232 = vld [vmem:[%s220 + $0x50] sm:$0xff]
                  %233 = vst [vmem:[%s221 + $0x28] sm:$0xff] %v232
                  %v234 = vld [vmem:[%s220 + $0x60] sm:$0xff]
                  %235 = vst [vmem:[%s221 + $0x30] sm:$0xff] %v234
                  %v236 = vld [vmem:[%s220 + $0x70] sm:$0xff]
                  %237 = vst [vmem:[%s221 + $0x38] sm:$0xff] %v236
                  %v238 = vld [vmem:[%s220 + $0x80] sm:$0xff]
                  %239 = vst [vmem:[%s221 + $0x40] sm:$0xff] %v238
                  %v240 = vld [vmem:[%s220 + $0x90] sm:$0xff]
                  %241 = vst [vmem:[%s221 + $0x48] sm:$0xff] %v240
                  %v242 = vld [vmem:[%s220 + $0xa0] sm:$0xff]
                  %243 = vst [vmem:[%s221 + $0x50] sm:$0xff] %v242
                  %v244 = vld [vmem:[%s220 + $0xb0] sm:$0xff]
                  %245 = vst [vmem:[%s221 + $0x58] sm:$0xff] %v244
                  %v246 = vld [vmem:[%s220 + $0xc0] sm:$0xff]
                  %247 = vst [vmem:[%s221 + $0x60] sm:$0xff] %v246
                  %v248 = vld [vmem:[%s220 + $0xd0] sm:$0xff]
                  %249 = vst [vmem:[%s221 + $0x68] sm:$0xff] %v248
                  %v250 = vld [vmem:[%s220 + $0xe0] sm:$0xff]
                  %251 = vst [vmem:[%s221 + $0x70] sm:$0xff] %v250
                  %v252 = vld [vmem:[%s220 + $0xf0] sm:$0xff]
                  %253 = vst [vmem:[%s221 + $0x78] sm:$0xff] %v252
                $region56: #{gen_deconv_forward.1} parent=50 // loop_footer
                  %s219 = sadd.s32 1, %s215
                $region57: #{gen_deconv_forward.1} parent=50 // loop_footer_branch
                  %214 = sbr.rel target = $region53
                $region58: #{gen_deconv_forward.1} parent=50 // loop_exit
                  _
              $region51: #{gen_deconv_forward.1} parent=35 // pred_fallthru
                _
              // Predicated region
              $region59: #{gen_deconv_forward.1} parent=35 // pred_check
                _
              $region60: #{gen_deconv_forward.1} parent=35 // pred_check_branch
                %255 = sbr.rel target = $region62
              $region61: #{gen_deconv_forward.1} parent=35 // pred_region
                _
              $region62: #{gen_deconv_forward.1} parent=35 // pred_fallthru
                _
            $region36: #{gen_deconv_forward.1} parent=31 // pred_fallthru
              _
            // Predicated region
            $region37: #{gen_deconv_forward.1} parent=31 // pred_check
              _
            $region38: #{gen_deconv_forward.1} parent=31 // pred_check_branch
              %169 = sbr.rel target = $region40
            $region39: #{gen_deconv_forward.1} parent=31 // pred_region
              %s171 = ssub.s32 256, 1
              loop: start=0, step=1, limit=1
              $region41: #{gen_deconv_forward.1} parent=39 // loop_pre_header
                _
              $region42: #{gen_deconv_forward.1} parent=39 // loop_header
                %s173 = sphi 0, %s177
                %p174 = scmp.ge.s32.totalorder %s173, 1
                %s178 = sphi %s163, %s163
                %s179 = sphi %s157, %s157
              $region43: #{gen_deconv_forward.1} parent=39 // loop_header_branch
                %176 = sbr.rel (%p174) target = $region47
              $region44: #{gen_deconv_forward.1} parent=39 // loop_body
                %v180 = vld [vmem:[%s178] sm:%s171]
                %181 = vst [vmem:[%s179] sm:%s171] %v180
                %v182 = vld [vmem:[%s178 + $0x10] sm:%s171]
                %183 = vst [vmem:[%s179 + $0x8] sm:%s171] %v182
                %v184 = vld [vmem:[%s178 + $0x20] sm:%s171]
                %185 = vst [vmem:[%s179 + $0x10] sm:%s171] %v184
                %v186 = vld [vmem:[%s178 + $0x30] sm:%s171]
                %187 = vst [vmem:[%s179 + $0x18] sm:%s171] %v186
                %v188 = vld [vmem:[%s178 + $0x40] sm:%s171]
                %189 = vst [vmem:[%s179 + $0x20] sm:%s171] %v188
                %v190 = vld [vmem:[%s178 + $0x50] sm:%s171]
                %191 = vst [vmem:[%s179 + $0x28] sm:%s171] %v190
                %v192 = vld [vmem:[%s178 + $0x60] sm:%s171]
                %193 = vst [vmem:[%s179 + $0x30] sm:%s171] %v192
                %v194 = vld [vmem:[%s178 + $0x70] sm:%s171]
                %195 = vst [vmem:[%s179 + $0x38] sm:%s171] %v194
                %v196 = vld [vmem:[%s178 + $0x80] sm:%s171]
                %197 = vst [vmem:[%s179 + $0x40] sm:%s171] %v196
                %v198 = vld [vmem:[%s178 + $0x90] sm:%s171]
                %199 = vst [vmem:[%s179 + $0x48] sm:%s171] %v198
                %v200 = vld [vmem:[%s178 + $0xa0] sm:%s171]
                %201 = vst [vmem:[%s179 + $0x50] sm:%s171] %v200
                %v202 = vld [vmem:[%s178 + $0xb0] sm:%s171]
                %203 = vst [vmem:[%s179 + $0x58] sm:%s171] %v202
                %v204 = vld [vmem:[%s178 + $0xc0] sm:%s171]
                %205 = vst [vmem:[%s179 + $0x60] sm:%s171] %v204
                %v206 = vld [vmem:[%s178 + $0xd0] sm:%s171]
                %207 = vst [vmem:[%s179 + $0x68] sm:%s171] %v206
                %v208 = vld [vmem:[%s178 + $0xe0] sm:%s171]
                %209 = vst [vmem:[%s179 + $0x70] sm:%s171] %v208
                %v210 = vld [vmem:[%s178 + $0xf0] sm:%s171]
                %211 = vst [vmem:[%s179 + $0x78] sm:%s171] %v210
              $region45: #{gen_deconv_forward.1} parent=39 // loop_footer
                %s177 = sadd.s32 1, %s173
              $region46: #{gen_deconv_forward.1} parent=39 // loop_footer_branch
                %172 = sbr.rel target = $region42
              $region47: #{gen_deconv_forward.1} parent=39 // loop_exit
                _
            $region40: #{gen_deconv_forward.1} parent=31 // pred_fallthru
              _
          $region32: #{gen_deconv_forward.1} parent=27 // pred_fallthru
            _
          %256 = vnop
        $region28: #{gen_deconv_forward.1} parent=23 // pred_fallthru
          _
      $region24: #{gen_deconv_forward.1} parent=5 // pred_fallthru
        _
      %p257 = scmp.le.s32.totalorder 1, %s9
      %p258 = scmp.lt.s32.totalorder %s9, 3
      %p259 = pnand %p257, %p258
      %p260 = pneg %p259
      // Predicated region
      $region63: #{gen_deconv_forward.1} parent=5 // pred_check
        _
      $region64: #{gen_deconv_forward.1} parent=5 // pred_check_branch
        %262 = sbr.rel (%p259) target = $region66
      $region65: #{gen_deconv_forward.1} parent=5 // pred_region
        %s263 = ssub.s32 %s9, 1
        %s264 = sand.u32 %s62, 1
        %s265 = sand.u32 %s62, 1
        %s266 = smul.addr %s265, 128
        %s267 = scalar_lea.vmem [#allocation3], %s266
        // Predicated region
        $region67: #{gen_deconv_forward.1} parent=65 // pred_check
          %p268 = pneg %p75
        $region68: #{gen_deconv_forward.1} parent=65 // pred_check_branch
          %270 = sbr.rel (%p268) target = $region70
        $region69: #{gen_deconv_forward.1} parent=65 // pred_region
          _
        $region70: #{gen_deconv_forward.1} parent=65 // pred_fallthru
          _
        %p271 = scmp.lt.s32.totalorder %s19, 0
        %s272 = scalar_select %p271, %s19, 0
        %s273 = smul.addr %s272, 4
        %s274 = scalar_lea.vmem %s0, %s273
        %p275 = pneg %p47
        %p276 = pneg %p44
        %s277 = sand.u32 %s62, 1
        %s278 = sand.u32 %s62, 1
        %s279 = smul.addr %s278, 128
        %s280 = scalar_lea.vmem [#allocation3], %s279
        %p281 = pneg %p75
        %p282 = pneg %p72
        %p283 = pneg %p96
        %p284 = pneg %p93
        %p285 = pneg %p122
        %p286 = pneg %p119
        %s287 = smul.u32 2, %s18
        %p288 = scmp.lt.s32.totalorder %s287, 3
        %s289 = scalar_select %p288, %s287, 3
        %s290 = smul.addr %s289, 8
        %s291 = scalar_lea.vmem %s3, %s290
        %p292 = scmp.lt.s32.totalorder %s19, 0
        %s293 = scalar_select %p292, %s19, 0
        %s294 = smul.addr %s293, 4
        %s295 = scalar_lea.vmem %s0, %s294
        %s296 = smul.u32 16, %s19
        %s297 = smul.u32 2, %s18
        %s298 = smul.u32 2, %s18
        %p299 = scmp.lt.s32.totalorder %s298, 3
        %s300 = scalar_select %p299, %s298, 3
        %s301 = smul.addr %s300, 8
        %s302 = scalar_lea.vmem %s3, %s301
        %s303 = smul.u32 2, %s18
        %p305 = scmp.eq.s32.totalorder %s19, 0
        // Predicated region
        $region71: #{gen_deconv_forward.1} parent=65 // pred_check
          %p306 = pneg %p305
        $region72: #{gen_deconv_forward.1} parent=65 // pred_check_branch
          %308 = sbr.rel (%p306) target = $region74
        $region73: #{gen_deconv_forward.1} parent=65 // pred_region
          %309 = vst [vmem:[#allocation2] sm:$0xff] 0.0
          %310 = vst [vmem:[#allocation2 + $0x8] sm:$0xff] 0.0
        $region74: #{gen_deconv_forward.1} parent=65 // pred_fallthru
          _
        %v311 = vld [vmem:[#allocation2] sm:$0xff]
        %v312 = vld [vmem:[#allocation2 + $0x8] sm:$0xff]
        %v313 = vld [vmem:[%s295] sm:$0xf]
        %v314 = vld [vmem:[%s267] sm:$0xff]
        %v315 = vld [vmem:[%s267 + $0x8] sm:$0xff]
        %v316 = vld [vmem:[%s267 + $0x10] sm:$0xff]
        %v317 = vld [vmem:[%s267 + $0x18] sm:$0xff]
        %v318 = vld [vmem:[%s267 + $0x20] sm:$0xff]
        %v319 = vld [vmem:[%s267 + $0x28] sm:$0xff]
        %v320 = vld [vmem:[%s267 + $0x30] sm:$0xff]
        %v321 = vld [vmem:[%s267 + $0x38] sm:$0xff]
        %v322 = vld [vmem:[%s267 + $0x40] sm:$0xff]
        %v323 = vld [vmem:[%s267 + $0x48] sm:$0xff]
        %v324 = vld [vmem:[%s267 + $0x50] sm:$0xff]
        %v325 = vld [vmem:[%s267 + $0x58] sm:$0xff]
        %v326 = vld [vmem:[%s267 + $0x60] sm:$0xff]
        %v327 = vld [vmem:[%s267 + $0x68] sm:$0xff]
        %v328 = vld [vmem:[%s267 + $0x70] sm:$0xff]
        %v329 = vld [vmem:[%s267 + $0x78] sm:$0xff]
        %v346 = vunpack.c.l.b16 %v314
        %v347 = vunpack.c.h.b16 %v314
        %v348 = vunpack.c.l.b16 %v315
        %v349 = vunpack.c.h.b16 %v315
        %v350 = vunpack.c.l.b16 %v316
        %v351 = vunpack.c.h.b16 %v316
        %v352 = vunpack.c.l.b16 %v317
        %v353 = vunpack.c.h.b16 %v317
        %v354 = vunpack.c.l.b16 %v318
        %v355 = vunpack.c.h.b16 %v318
        %v356 = vunpack.c.l.b16 %v319
        %v357 = vunpack.c.h.b16 %v319
        %v358 = vunpack.c.l.b16 %v320
        %v359 = vunpack.c.h.b16 %v320
        %v360 = vunpack.c.l.b16 %v321
        %v361 = vunpack.c.h.b16 %v321
        %v362 = vunpack.c.l.b16 %v322
        %v363 = vunpack.c.h.b16 %v322
        %v364 = vunpack.c.l.b16 %v323
        %v365 = vunpack.c.h.b16 %v323
        %v366 = vunpack.c.l.b16 %v324
        %v367 = vunpack.c.h.b16 %v324
        %v368 = vunpack.c.l.b16 %v325
        %v369 = vunpack.c.h.b16 %v325
        %v370 = vunpack.c.l.b16 %v326
        %v371 = vunpack.c.h.b16 %v326
        %v372 = vunpack.c.l.b16 %v327
        %v373 = vunpack.c.h.b16 %v327
        %v374 = vunpack.c.l.b16 %v328
        %v375 = vunpack.c.h.b16 %v328
        %v376 = vunpack.c.l.b16 %v329
        %v377 = vunpack.c.h.b16 %v329
        %v378 = vpack.c.b16 %v348, %v346
        %v379 = vpack.c.b16 %v349, %v347
        %v380 = vpack.c.b16 %v352, %v350
        %v381 = vpack.c.b16 %v353, %v351
        %v382 = vpack.c.b16 %v356, %v354
        %v383 = vpack.c.b16 %v357, %v355
        %v384 = vpack.c.b16 %v360, %v358
        %v385 = vpack.c.b16 %v361, %v359
        %v386 = vpack.c.b16 %v364, %v362
        %v387 = vpack.c.b16 %v365, %v363
        %v388 = vpack.c.b16 %v368, %v366
        %v389 = vpack.c.b16 %v369, %v367
        %v390 = vpack.c.b16 %v372, %v370
        %v391 = vpack.c.b16 %v373, %v371
        %v392 = vpack.c.b16 %v376, %v374
        %v393 = vpack.c.b16 %v377, %v375
        %410 = vmatprep.subr.bf16.mxu0 %v393
        %411 = vmatpush1.bf16.msra.mxu0 %v392
        %412 = vmatprep.subr.bf16.mxu0 %v391
        %413 = vmatpush1.bf16.msra.mxu0 %v390
        %414 = vmatprep.subr.bf16.mxu0 %v389
        %415 = vmatpush1.bf16.msra.mxu0 %v388
        %416 = vmatprep.subr.bf16.mxu0 %v387
        %417 = vmatpush1.bf16.msra.mxu0 %v386
        %418 = vmatprep.subr.bf16.mxu0 %v385
        %419 = vmatpush1.bf16.msra.mxu0 %v384
        %420 = vmatprep.subr.bf16.mxu0 %v383
        %421 = vmatpush1.bf16.msra.mxu0 %v382
        %422 = vmatprep.subr.bf16.mxu0 %v381
        %423 = vmatpush1.bf16.msra.mxu0 %v380
        %424 = vmatprep.subr.bf16.mxu0 %v379
        %425 = vmatpush1.bf16.msra.mxu0 %v378
        %426 = vmatprep.subr.bf16.mxu0 0
        %427 = vmatpush2.bf16.msra.mxu0 0
        %428 = vmatprep.subr.bf16.mxu0 0
        %429 = vmatpush2.bf16.msra.mxu0 0
        %430 = vmatprep.subr.bf16.mxu0 0
        %431 = vmatpush2.bf16.msra.mxu0 0
        %432 = vmatprep.subr.bf16.mxu0 0
        %433 = vmatpush2.bf16.msra.mxu0 0
        %434 = vmatprep.subr.bf16.mxu0 0
        %435 = vmatpush2.bf16.msra.mxu0 0
        %436 = vmatprep.subr.bf16.mxu0 0
        %437 = vmatpush2.bf16.msra.mxu0 0
        %438 = vmatprep.subr.bf16.mxu0 0
        %439 = vmatpush2.bf16.msra.mxu0 0
        %440 = vmatprep.subr.bf16.mxu0 0
        %441 = vmatpush2.bf16.msra.mxu0 0
        %442 = vmatprep.mubr.bf16.mxu0 0
        %443 = vmatmul.mubr.bf16.gmra.mxu0 %v313
        %v444 = vpop.f32.mrf.mxu0
        %v445 = vadd.f32 0.0, %v444
        %v446 = vpop.f32.mrf.mxu0
        %v447 = vadd.f32 0.0, %v446
        %v448 = vpop.f32.mrf.mxu0
        %v449 = vpop.f32.mrf.mxu0
        %450 = vdwg.mxu0
        %v451 = vadd.f32 %v311, %v445
        %v452 = vadd.f32 %v312, %v447
        %453 = vst [vmem:[#allocation2] sm:$0xff] %v451
        %454 = vst [vmem:[#allocation2 + $0x8] sm:$0xff] %v452
        // Predicated region
        $region75: #{gen_deconv_forward.1} parent=65 // pred_check
          %p455 = pneg %p305
        $region76: #{gen_deconv_forward.1} parent=65 // pred_check_branch
          %457 = sbr.rel (%p455) target = $region78
        $region77: #{gen_deconv_forward.1} parent=65 // pred_region
          %v458 = vld [vmem:[#allocation2] sm:$0xff]
          %v459 = vld [vmem:[#allocation2 + $0x8] sm:$0xff]
          %v460 = vld [vmem:[%s2] sm:$0xff]
          %462 = vset.pattern.permute.xlu0 0
          %463 = vperm.xlu0 %462, %v460
          %v464 = vpop.permute.xlu0 %463
          %v466 = vadd.f32 %v458, %v464
          %v467 = vadd.f32 %v459, %v464
          %v468 = vmul.f32 %v466, %v466
          %v469 = vmul.f32 %v467, %v467
          %v470 = vrot.slane %v468, 4
          %v471 = vadd.f32 %v468, %v470
          %v472 = vrot.slane %v471, 2
          %v473 = vadd.f32 %v471, %v472
          %v474 = vrot.slane %v473, 1
          %v475 = vadd.f32 %v473, %v474
          %v476 = vrot.slane %v469, 4
          %v477 = vadd.f32 %v469, %v476
          %v478 = vrot.slane %v477, 2
          %v479 = vadd.f32 %v477, %v478
          %v480 = vrot.slane %v479, 1
          %v481 = vadd.f32 %v479, %v480
          %v482 = vrcp.pop 8.0
          %v483 = vmul.f32 %v475, %v482
          %v484 = vmul.f32 %v481, %v482
          %v485 = vadd.f32 %v483, 1e-08
          %v486 = vadd.f32 %v484, 1e-08
          %v487 = vrsqrt.pop %v485
          %v488 = vrsqrt.pop %v486
          %v489 = vmul.f32 %v466, %v487
          %v490 = vmul.f32 %v467, %v488
          %vm491 = vcmp.ge.f32.partialorder %v489, 0.0
          %vm492 = vcmp.ge.f32.partialorder %v490, 0.0
          %v493 = vmul.f32 %v489, 0.2
          %v494 = vmul.f32 %v490, 0.2
          %v495 = vsel %vm491, %v489, %v493
          %v496 = vsel %vm492, %v490, %v494
          %497 = vst [vmem:[%s302] sm:$0xff] %v495
          %498 = vst [vmem:[%s302 + $0x8] sm:$0xff] %v496
        $region78: #{gen_deconv_forward.1} parent=65 // pred_fallthru
          _
        %s499 = smul.u32 2, %s18
        %p500 = scmp.lt.s32.totalorder %s499, 3
        %s501 = scalar_select %p500, %s499, 3
        %s502 = smul.addr %s501, 8
        %s503 = scalar_lea.vmem %s3, %s502
        // Predicated region
        $region79: #{gen_deconv_forward.1} parent=65 // pred_check
          %p504 = pneg %p119
        $region80: #{gen_deconv_forward.1} parent=65 // pred_check_branch
          %506 = sbr.rel (%p504) target = $region82
        $region81: #{gen_deconv_forward.1} parent=65 // pred_region
          %s507 = smul.u32 2, %s18
        $region82: #{gen_deconv_forward.1} parent=65 // pred_fallthru
          _
      $region66: #{gen_deconv_forward.1} parent=5 // pred_fallthru
        _
      %p508 = scmp.le.s32.totalorder 2, %s9
      // Predicated region
      $region83: #{gen_deconv_forward.1} parent=5 // pred_check
        %p509 = pneg %p508
      $region84: #{gen_deconv_forward.1} parent=5 // pred_check_branch
        %511 = sbr.rel (%p509) target = $region86
      $region85: #{gen_deconv_forward.1} parent=5 // pred_region
        %s512 = ssub.s32 %s9, 2
        // Predicated region
        $region87: #{gen_deconv_forward.1} parent=85 // pred_check
          %p513 = pneg %p125
        $region88: #{gen_deconv_forward.1} parent=85 // pred_check_branch
          %515 = sbr.rel (%p513) target = $region90
        $region89: #{gen_deconv_forward.1} parent=85 // pred_region
          %s516 = smul.u32 2, %s20
          %p517 = scmp.lt.s32.totalorder %s516, 3
          %s518 = scalar_select %p517, %s516, 3
          %s519 = smul.addr %s518, 8
          %s520 = scalar_lea.vmem %s3, %s519
        $region90: #{gen_deconv_forward.1} parent=85 // pred_fallthru
          _
      $region86: #{gen_deconv_forward.1} parent=5 // pred_fallthru
        _
    $region6: #{gen_deconv_forward.1} parent=1 // loop_footer
      %s13 = sadd.s32 1, %s9
    $region7: #{gen_deconv_forward.1} parent=1 // loop_footer_branch
      %8 = sbr.rel target = $region3
    $region8: #{gen_deconv_forward.1} parent=1 // loop_exit
      _

</llo_original>
